<compile_context>
chip_gen: v7x
topology: tpu7x:2x2x1
jax: 0.10.0
libtpu: 0.0.40
codegen_flags: <defaults>
</compile_context>

<pallas_src>
import functools

import jax
import jax.numpy as jnp
from jax import lax
from jax.experimental import pallas as pl
from jax.experimental.pallas import tpu as pltpu


def _round_up(x, m):
    return (x + m - 1) // m * m


_DEFAULT_VMEM_LIMIT = 32 * 1024 * 1024


# ----------------------------- linear kernels -------------------------------

def _linear_k1_kernel(x_ref, w_ref, o_ref):
    # whole-K contraction: no accumulator, no k grid axis, no pl.when.
    o_ref[...] = jnp.dot(x_ref[...], w_ref[...],
                         preferred_element_type=jnp.float32).astype(o_ref.dtype)


def _linear_k1_bias_kernel(x_ref, w_ref, b_ref, o_ref):
    acc = jnp.dot(x_ref[...], w_ref[...], preferred_element_type=jnp.float32)
    o_ref[...] = (acc + b_ref[...]).astype(o_ref.dtype)


def _linear_acc_kernel(x_ref, w_ref, o_ref, acc_ref):
    @pl.when(pl.program_id(2) == 0)
    def _init():
        acc_ref[...] = jnp.zeros_like(acc_ref)

    acc_ref[...] += jnp.dot(x_ref[...], w_ref[...],
                            preferred_element_type=jnp.float32)

    @pl.when(pl.program_id(2) == pl.num_programs(2) - 1)
    def _done():
        o_ref[...] = acc_ref[...].astype(o_ref.dtype)


def _linear_acc_bias_kernel(x_ref, w_ref, b_ref, o_ref, acc_ref):
    @pl.when(pl.program_id(2) == 0)
    def _init():
        acc_ref[...] = jnp.zeros_like(acc_ref)

    acc_ref[...] += jnp.dot(x_ref[...], w_ref[...],
                            preferred_element_type=jnp.float32)

    @pl.when(pl.program_id(2) == pl.num_programs(2) - 1)
    def _done():
        o_ref[...] = (acc_ref[...] + b_ref[...]).astype(o_ref.dtype)


def _qkv_proj_kernel(x_ref, wq_ref, wk_ref, wv_ref, q_ref, k_ref, v_ref):
    # Fused QKV: x tile is read from HBM once and reused for all three
    # projections; outputs are three separate (lane-aligned) arrays.
    x = x_ref[...]
    q_ref[...] = jnp.dot(x, wq_ref[...],
                         preferred_element_type=jnp.float32).astype(q_ref.dtype)
    k_ref[...] = jnp.dot(x, wk_ref[...],
                         preferred_element_type=jnp.float32).astype(k_ref.dtype)
    v_ref[...] = jnp.dot(x, wv_ref[...],
                         preferred_element_type=jnp.float32).astype(v_ref.dtype)


# ----------------------------- linear wrappers -------------------------------

def pallas_linear(x, w_t, b=None, *, tm=512, tn=512, tk=512,
                  vmem_limit_bytes=_DEFAULT_VMEM_LIMIT):
    """y = x @ w_t (+ b).  x: (M, K), w_t: (K, N) pre-transposed, b: (N,)|None.

    Blocks equal the full dimension whenever it fits one tile (no padding /
    post-call slicing for small problems).  If K fits one tile the kernel has
    no accumulator scratch and no reduction grid axis.
    """
    M, K = x.shape
    Kw, N = w_t.shape
    assert K == Kw, (K, Kw)

    def pick(dim, t):
        if dim <= t:
            return dim, dim          # full-dim block, no padding
        return t, _round_up(dim, t)

    tm_e, Mp = pick(M, tm)
    tn_e, Np = pick(N, tn)
    tk_e, Kp = pick(K, tk)

    x_p = x if (Mp, Kp) == (M, K) else jnp.pad(x, ((0, Mp - M), (0, Kp - K)))
    w_p = w_t if (Kp, Np) == (K, N) else jnp.pad(w_t, ((0, Kp - K), (0, Np - N)))
    if b is not None:
        b_p = (b if Np == N else jnp.pad(b, ((0, Np - N),))).reshape(1, Np)

    k_tiles = Kp // tk_e
    if k_tiles == 1:
        grid = (Mp // tm_e, Np // tn_e)
        x_spec = pl.BlockSpec((tm_e, Kp), lambda i, j: (i, 0))
        w_spec = pl.BlockSpec((Kp, tn_e), lambda i, j: (0, j))
        o_spec = pl.BlockSpec((tm_e, tn_e), lambda i, j: (i, j))
        cparams = pltpu.CompilerParams(
            dimension_semantics=("parallel", "parallel"),
            vmem_limit_bytes=vmem_limit_bytes)
        if b is None:
            out = pl.pallas_call(
                _linear_k1_kernel,
                out_shape=jax.ShapeDtypeStruct((Mp, Np), x.dtype),
                grid=grid, in_specs=[x_spec, w_spec], out_specs=o_spec,
                compiler_params=cparams)(x_p, w_p)
        else:
            b_spec = pl.BlockSpec((1, tn_e), lambda i, j: (0, j))
            out = pl.pallas_call(
                _linear_k1_bias_kernel,
                out_shape=jax.ShapeDtypeStruct((Mp, Np), x.dtype),
                grid=grid, in_specs=[x_spec, w_spec, b_spec], out_specs=o_spec,
                compiler_params=cparams)(x_p, w_p, b_p)
    else:
        grid = (Mp // tm_e, Np // tn_e, k_tiles)
        x_spec = pl.BlockSpec((tm_e, tk_e), lambda i, j, kk: (i, kk))
        w_spec = pl.BlockSpec((tk_e, tn_e), lambda i, j, kk: (kk, j))
        o_spec = pl.BlockSpec((tm_e, tn_e), lambda i, j, kk: (i, j))
        cparams = pltpu.CompilerParams(
            dimension_semantics=("parallel", "parallel", "arbitrary"),
            vmem_limit_bytes=vmem_limit_bytes)
        scratch = [pltpu.VMEM((tm_e, tn_e), jnp.float32)]
        if b is None:
            out = pl.pallas_call(
                _linear_acc_kernel,
                out_shape=jax.ShapeDtypeStruct((Mp, Np), x.dtype),
                grid=grid, in_specs=[x_spec, w_spec], out_specs=o_spec,
                scratch_shapes=scratch, compiler_params=cparams)(x_p, w_p)
        else:
            b_spec = pl.BlockSpec((1, tn_e), lambda i, j, kk: (0, j))
            out = pl.pallas_call(
                _linear_acc_bias_kernel,
                out_shape=jax.ShapeDtypeStruct((Mp, Np), x.dtype),
                grid=grid, in_specs=[x_spec, w_spec, b_spec], out_specs=o_spec,
                scratch_shapes=scratch, compiler_params=cparams)(x_p, w_p, b_p)

    if (Mp, Np) != (M, N):
        out = out[:M, :N]
    return out


def pallas_qkv_proj(x, wq_t, wk_t, wv_t, *, tm=512,
                    vmem_limit_bytes=_DEFAULT_VMEM_LIMIT):
    """Fused self-attention QKV projection: one HBM pass over x, three
    separate lane-aligned outputs (no misaligned qkv slicing afterwards)."""
    M, K = x.shape
    N = wq_t.shape[1]
    assert wq_t.shape == wk_t.shape == wv_t.shape == (K, N)

    if M <= tm:
        tm_e, Mp = M, M
    else:
        tm_e, Mp = tm, _round_up(M, tm)
    x_p = x if Mp == M else jnp.pad(x, ((0, Mp - M), (0, 0)))

    grid = (Mp // tm_e,)
    outs = pl.pallas_call(
        _qkv_proj_kernel,
        out_shape=tuple(jax.ShapeDtypeStruct((Mp, N), x.dtype) for _ in range(3)),
        grid=grid,
        in_specs=[pl.BlockSpec((tm_e, K), lambda i: (i, 0)),
                  pl.BlockSpec((K, N), lambda i: (0, 0)),
                  pl.BlockSpec((K, N), lambda i: (0, 0)),
                  pl.BlockSpec((K, N), lambda i: (0, 0))],
        out_specs=tuple(pl.BlockSpec((tm_e, N), lambda i: (i, 0))
                        for _ in range(3)),
        compiler_params=pltpu.CompilerParams(
            dimension_semantics=("parallel",),
            vmem_limit_bytes=vmem_limit_bytes),
    )(x_p, wq_t, wk_t, wv_t)

    q, k, v = outs
    if Mp != M:
        q, k, v = q[:M], k[:M], v[:M]
    return q, k, v


# --------------------------- flash attention kernel ---------------------------

def _flash_attn_kernel(q_ref, k_ref, v_ref, o_ref, m_sc, l_sc, acc_sc, *,
                       scale, nk_valid, tk):
    ki = pl.program_id(3)

    @pl.when(ki == 0)
    def _init():
        m_sc[...] = jnp.full(m_sc.shape, -jnp.inf, dtype=m_sc.dtype)
        l_sc[...] = jnp.zeros_like(l_sc)
        acc_sc[...] = jnp.zeros_like(acc_sc)

    # native-dtype tiles (no f32 upcast before the MXU dots)
    q = q_ref[0, 0]                                   # (tq, d)
    k = k_ref[0, 0]                                   # (tk, d)
    v = v_ref[0, 0]                                   # (tk, d)

    # q @ k^T contracting the last dims (no relayout of k), f32 accumulation.
    s = lax.dot_general(q, k, (((1,), (1,)), ((), ())),
                        preferred_element_type=jnp.float32)   # (tq, tk)
    if scale != 1.0:            # static: only for the un-fused (no-proj) path
        s = s * scale
    if nk_valid is not None:    # static: only when the KV length was padded
        col = ki * tk + lax.broadcasted_iota(jnp.int32, s.shape, 1)
        s = jnp.where(col < nk_valid, s, -1e30)

    # online softmax (f32 accumulators)
    m_prev = m_sc[...]
    m_new = jnp.maximum(m_prev, s.max(axis=-1, keepdims=True))
    alpha = jnp.exp(m_prev - m_new)
    p = jnp.exp(s - m_new)
    l_sc[...] = alpha * l_sc[...] + p.sum(axis=-1, keepdims=True)
    acc_sc[...] = alpha * acc_sc[...] + jnp.dot(
        p.astype(v.dtype), v, preferred_element_type=jnp.float32)
    m_sc[...] = m_new

    @pl.when(ki == pl.num_programs(3) - 1)
    def _done():
        inv = pl.reciprocal(l_sc[...], approx=True)
        o_ref[0, 0] = (acc_sc[...] * inv).astype(o_ref.dtype)


def _split_heads(x, heads, dim_head):
    B, N, _ = x.shape
    return x.reshape(B, N, heads, dim_head).transpose(0, 2, 1, 3)


def _merge_heads(x):
    B, H, N, D = x.shape
    return x.transpose(0, 2, 1, 3).reshape(B, N, H * D)


def pallas_flash_attention(q, k, v, *, heads, dim_head, scale=1.0,
                           tq=256, tkv=512,
                           vmem_limit_bytes=_DEFAULT_VMEM_LIMIT):
    """q: (B, Nq, heads*d), k/v: (B, Nk, heads*d) -> (B, Nq, heads*d).

    Flash-style: grid (B, heads, Nq_tiles, Nk_tiles); online softmax over the
    KV axis with VMEM scratch accumulators.  B / heads / Nq tiles are parallel
    grid axes (v7x's two TensorCores get work even at small B); the KV axis is
    the innermost reduction.  Tile sizes keep the per-step footprint far below
    v7x's 64 MiB VMEM.
    """
    B, Nq, inner = q.shape
    Nk = k.shape[1]
    D = dim_head
    assert inner == heads * dim_head

    qh = _split_heads(q, heads, D)       # (B, H, Nq, D)
    kh = _split_heads(k, heads, D)
    vh = _split_heads(v, heads, D)

    tq_e = Nq if Nq <= tq else tq
    tk_e = Nk if Nk <= tkv else tkv
    Nq_p = _round_up(Nq, tq_e)
    Nk_p = _round_up(Nk, tk_e)
    if Nq_p != Nq:
        qh = jnp.pad(qh, ((0, 0), (0, 0), (0, Nq_p - Nq), (0, 0)))
    if Nk_p != Nk:
        kh = jnp.pad(kh, ((0, 0), (0, 0), (0, Nk_p - Nk), (0, 0)))
        vh = jnp.pad(vh, ((0, 0), (0, 0), (0, Nk_p - Nk), (0, 0)))

    grid = (B, heads, Nq_p // tq_e, Nk_p // tk_e)
    kern = functools.partial(_flash_attn_kernel, scale=scale,
                             nk_valid=(Nk if Nk_p != Nk else None), tk=tk_e)

    out = pl.pallas_call(
        kern,
        out_shape=jax.ShapeDtypeStruct((B, heads, Nq_p, D), q.dtype),
        grid=grid,
        in_specs=[
            pl.BlockSpec((1, 1, tq_e, D), lambda b, h, qi, ki: (b, h, qi, 0)),
            pl.BlockSpec((1, 1, tk_e, D), lambda b, h, qi, ki: (b, h, ki, 0)),
            pl.BlockSpec((1, 1, tk_e, D), lambda b, h, qi, ki: (b, h, ki, 0)),
        ],
        out_specs=pl.BlockSpec((1, 1, tq_e, D),
                               lambda b, h, qi, ki: (b, h, qi, 0)),
        scratch_shapes=[pltpu.VMEM((tq_e, 1), jnp.float32),
                        pltpu.VMEM((tq_e, 1), jnp.float32),
                        pltpu.VMEM((tq_e, D), jnp.float32)],
        compiler_params=pltpu.CompilerParams(
            dimension_semantics=("parallel", "parallel", "parallel",
                                 "arbitrary"),
            vmem_limit_bytes=vmem_limit_bytes),
    )(qh, kh, vh)

    if Nq_p != Nq:
        out = out[:, :, :Nq, :]
    return _merge_heads(out)


# ----------------------------- module (forward) -------------------------------

def init_attention_params(key, q_dim, heads, dim_head, out_dim=None,
                          dtype=jnp.float32):
    """nn.Linear-style init.  Weights stored PRE-TRANSPOSED as (in, out); the
    softmax scale is folded into the Q weight once at init (free at runtime).
    Pass dtype=jnp.bfloat16 for the bf16 MXU fast path (looser tolerances)."""
    inner_dim = heads * dim_head
    project_out = not (heads == 1 and dim_head == q_dim)
    scale = dim_head ** (-0.5)
    ks = jax.random.split(key, 4)

    def lin_w(kk, out_f, in_f):
        bound = 1.0 / jnp.sqrt(in_f)
        return jax.random.uniform(kk, (out_f, in_f), jnp.float32, -bound, bound)

    wq = lin_w(ks[0], inner_dim, q_dim)
    wk = lin_w(ks[1], inner_dim, q_dim)
    wv = lin_w(ks[2], inner_dim, q_dim)
    params = {
        "wq_t": wq.T.astype(dtype),                      # unscaled (reference)
        "wk_t": wk.T.astype(dtype),
        "wv_t": wv.T.astype(dtype),
        "wq_t_scaled": (wq.T * scale).astype(dtype),     # scale folded in
    }
    o_out = out_dim if out_dim is not None else (q_dim if project_out else None)
    if o_out is not None:
        bound = 1.0 / jnp.sqrt(inner_dim)
        wo = jax.random.uniform(ks[3], (o_out, inner_dim), jnp.float32,
                                -bound, bound)
        bo = jax.random.uniform(jax.random.fold_in(ks[3], 1), (o_out,),
                                jnp.float32, -bound, bound)
        params["wo_t"], params["bo"] = wo.T.astype(dtype), bo.astype(dtype)
    else:
        params["wo_t"], params["bo"] = None, None        # nn.Identity
    return params


def attention_forward(params, q_in, k_in, v_in, *, heads, dim_head,
                      create_heads=True):
    """Mirrors Attention.forward. q_in/k_in/v_in: (B, N, q_dim)."""
    B, Nq, _ = q_in.shape
    Nk = k_in.shape[1]
    inner = heads * dim_head

    if create_heads:
        if (q_in is k_in) and (k_in is v_in):
            # self-attention: fused QKV projection (one HBM pass over x).
            # NOTE: Python identity check - logically-equal-but-distinct
            # arrays take the (still correct) 3-projection path below.
            x = q_in.reshape(B * Nq, -1)
            q, k, v = pallas_qkv_proj(x, params["wq_t_scaled"],
                                      params["wk_t"], params["wv_t"])
            q = q.reshape(B, Nq, inner)
            k = k.reshape(B, Nq, inner)
            v = v.reshape(B, Nq, inner)
        else:
            q = pallas_linear(q_in.reshape(B * Nq, -1),
                              params["wq_t_scaled"]).reshape(B, Nq, inner)
            k = pallas_linear(k_in.reshape(B * Nk, -1),
                              params["wk_t"]).reshape(B, Nk, inner)
            v = pallas_linear(v_in.reshape(B * Nk, -1),
                              params["wv_t"]).reshape(B, Nk, inner)
        scale = 1.0                     # already folded into wq
    else:
        q, k, v = q_in, k_in, v_in
        scale = dim_head ** (-0.5)      # must be applied in-kernel

    out = pallas_flash_attention(q, k, v, heads=heads, dim_head=dim_head,
                                 scale=scale)

    if params["wo_t"] is not None:
        out = pallas_linear(out.reshape(B * Nq, inner),
                            params["wo_t"], params["bo"]).reshape(B, Nq, -1)
    # TODO(synk): nn.Dropout(p=0.0) in eval mode is identity; omitted.
    return out


# ----------------------------- reference (pure JAX) ---------------------------

def attention_reference(params, q_in, k_in, v_in, *, heads, dim_head):
    B, Nq, _ = q_in.shape
    Nk = k_in.shape[1]
    inner = heads * dim_head
    scale = dim_head ** (-0.5)
    q = q_in @ params["wq_t"]
    k = k_in @ params["wk_t"]
    v = v_in @ params["wv_t"]
    qh = q.reshape(B, Nq, heads, dim_head).transpose(0, 2, 1, 3)
    kh = k.reshape(B, Nk, heads, dim_head).transpose(0, 2, 1, 3)
    vh = v.reshape(B, Nk, heads, dim_head).transpose(0, 2, 1, 3)
    dots = jnp.einsum("bhnd,bhmd->bhnm", qh, kh) * scale
    attn = jax.nn.softmax(dots, axis=-1)
    out = jnp.einsum("bhnm,bhmd->bhnd", attn, vh)
    out = out.transpose(0, 2, 1, 3).reshape(B, Nq, inner)
    if params["wo_t"] is not None:
        out = out @ params["wo_t"] + params["bo"]
    return out


# ----------------------------- main -------------------------------------------

if __name__ == "__main__":
    B, N, Q_DIM = 2, 8, 32
    HEADS, DIM_HEAD = 2, 16

    key = jax.random.PRNGKey(0)
    kq, kk_, kv, kp = jax.random.split(key, 4)
    q_in = jax.random.normal(kq, (B, N, Q_DIM), jnp.float32)
    k_in = jax.random.normal(kk_, (B, N, Q_DIM), jnp.float32)
    v_in = jax.random.normal(kv, (B, N, Q_DIM), jnp.float32)

    params = init_attention_params(kp, Q_DIM, HEADS, DIM_HEAD)

    # cross-attention path (separate tiled q/k/v projections)
    out = attention_forward(params, q_in, k_in, v_in,
                            heads=HEADS, dim_head=DIM_HEAD)
    out = jax.block_until_ready(out)
    ref = attention_reference(params, q_in, k_in, v_in,
                              heads=HEADS, dim_head=DIM_HEAD)
    assert out.shape == (B, N, Q_DIM), out.shape
    assert jnp.allclose(out, ref, atol=2e-2, rtol=2e-2), \
        float(jnp.max(jnp.abs(out - ref)))

    # self-attention path (exercises the fused QKV projection)
    out_self = attention_forward(params, q_in, q_in, q_in,
                                 heads=HEADS, dim_head=DIM_HEAD)
    out_self = jax.block_until_ready(out_self)
    ref_self = attention_reference(params, q_in, q_in, q_in,
                                   heads=HEADS, dim_head=DIM_HEAD)
    assert jnp.allclose(out_self, ref_self, atol=2e-2, rtol=2e-2), \
        float(jnp.max(jnp.abs(out_self - ref_self)))

    print("KERNEL_OK")
</pallas_src>

<mosaic_0001>
module attributes {stable_mosaic.version = 11 : i64} {
  func.func @_linear_k1_kernel(%arg0: i32, %arg1: i32, %arg2: memref<16x32xf32, #tpu.memory_space<vmem>>, %arg3: memref<32x32xf32, #tpu.memory_space<vmem>>, %arg4: memref<16x32xf32, #tpu.memory_space<vmem>>) attributes {dimension_semantics = [#tpu.dimension_semantics<parallel>, #tpu.dimension_semantics<parallel>], iteration_bounds = array<i64: 1, 1>, scalar_prefetch = 0 : i64, scratch_operands = 0 : i64, tpu.core_type = #tpu.core_type<tc>, window_params = [{transform_indices = @transform_0, window_bounds = array<i64: 16, 32>}, {transform_indices = @transform_1, window_bounds = array<i64: 32, 32>}, {transform_indices = @transform_2, window_bounds = array<i64: 16, 32>}]} {
    %c0 = arith.constant 0 : index
    %c0_0 = arith.constant 0 : index
    %0 = vector.load %arg2[%c0, %c0_0] : memref<16x32xf32, #tpu.memory_space<vmem>>, vector<16x32xf32>
    %c0_1 = arith.constant 0 : index
    %c0_2 = arith.constant 0 : index
    %1 = vector.load %arg3[%c0_1, %c0_2] : memref<32x32xf32, #tpu.memory_space<vmem>>, vector<32x32xf32>
    %cst = arith.constant dense<0.000000e+00> : vector<16x32xf32>
    %2 = tpu.matmul %0, %1, %cst {dimension_numbers = #tpu.dot_dimension_numbers<[1], [0], [0], [1], [0, 0, 1, 1], [], []>} : vector<16x32xf32>, vector<32x32xf32>, vector<16x32xf32> -> vector<16x32xf32>
    %c0_3 = arith.constant 0 : index
    %c0_4 = arith.constant 0 : index
    %3 = vector.load %arg4[%c0_3, %c0_4] : memref<16x32xf32, #tpu.memory_space<vmem>>, vector<16x32xf32>
    tpu.vector_store %arg4[%c0_3, %c0_4], %2 {strides = array<i32>} : memref<16x32xf32, #tpu.memory_space<vmem>>, vector<16x32xf32>,
    return
  }
  func.func @transform_0(%arg0: i32, %arg1: i32) -> (i32, i32) {
    %c0_i32 = arith.constant 0 : i32
    %c0_i32_0 = arith.constant 0 : i32
    return %arg0, %c0_i32 : i32, i32
  }
  func.func @transform_1(%arg0: i32, %arg1: i32) -> (i32, i32) {
    %c0_i32 = arith.constant 0 : i32
    %c0_i32_0 = arith.constant 0 : i32
    return %c0_i32, %arg1 : i32, i32
  }
  func.func @transform_2(%arg0: i32, %arg1: i32) -> (i32, i32) {
    %c0_i32 = arith.constant 0 : i32
    return %arg0, %arg1 : i32, i32
  }
}

</mosaic_0001>

<llo_original>
// kernel: tpu_custom_call.1
$region0: #{tpu_custom_call.1}
  #allocation0 [shape = 'u32[]', space=smem, size = 0x4, offset = 0x4, fixed_abs, tag = 'smem constant byte address 0x4 - core index']
  #allocation1 [shape = 'u32[144,128]{1,0:T(1,128)}', space=vmem, size = 0x12000, scoped, tag = 'internal scratch']
  %s0 = inlined_call_operand.hbm [shape: f32[16,32], index: 0, kind: input, shape index: {}]
  %s1 = inlined_call_operand.hbm [shape: f32[32,32], index: 1, kind: input, shape index: {}]
  %s2 = inlined_call_operand.hbm [shape: f32[16,32], index: 2, kind: output, shape index: {}]
  %s3 = sld [smem:[#allocation0]]
  $region26: #{tpu_custom_call.1} parent=0
    _
  %s5 = ssub.s32 1, %s3
  %s6 = scalar_select 0, %s5, %s3
  $region1: #{tpu_custom_call.1} parent=0
    #allocation2 [shape = 'u8[8192]{0}', space=vmem, size = 0x2000, scoped, tag = 'input window, operand 0, single buffered']
    #allocation3 [shape = 's32[1]{0}', space=sflag, size = 0x4, scoped, tag = 'scoped memory for tpu_custom_call.1']
    #allocation4 [shape = 's32[1]{0}', space=sflag, size = 0x4, scoped, tag = 'scoped memory for tpu_custom_call.1']
    #allocation5 [shape = 'u8[16384]{0}', space=vmem, size = 0x4000, scoped, tag = 'input window, operand 1, single buffered']
    #allocation6 [shape = 's32[1]{0}', space=sflag, size = 0x4, scoped, tag = 'scoped memory for tpu_custom_call.1']
    #allocation7 [shape = 'u8[8192]{0}', space=vmem, size = 0x2000, scoped, tag = 'output window, operand 0, single buffered']
    %7 = vsyncpa [#allocation3], 0
    %8 = vsyncpa [#allocation6], 0
    %9 = vsyncpa [#allocation4], 0
    // Predicated region
    $region2: #{tpu_custom_call.1} parent=1 // pred_check
      _
    $region3: #{tpu_custom_call.1} parent=1 // pred_check_branch
      %11 = sbr.rel (0) target = $region5
    $region4: #{tpu_custom_call.1} parent=1 // pred_region
      %s13 = ssub.s32 256, 256
      %14 = vsyncadd [#allocation3], %s13
      %s15 = sshll.u32 [#allocation2], 4
      %s16 = int_to_ptr.vmem [resolvable:$true] %s15
      %21 = dma.hbm_to_vmem [thread:$0]  %s0, 256, %s16, [#allocation3], 128, 128, 8
    $region5: #{tpu_custom_call.1} parent=1 // pred_fallthru
      _
    // Predicated region
    $region6: #{tpu_custom_call.1} parent=1 // pred_check
      _
    $region7: #{tpu_custom_call.1} parent=1 // pred_check_branch
      %23 = sbr.rel (0) target = $region9
    $region8: #{tpu_custom_call.1} parent=1 // pred_region
      %s25 = ssub.s32 512, 512
      %26 = vsyncadd [#allocation6], %s25
      %s27 = sshll.u32 [#allocation5], 4
      %s28 = int_to_ptr.vmem [resolvable:$true] %s27
      %33 = dma.hbm_to_vmem [thread:$0]  %s1, 512, %s28, [#allocation6], 128, 128, 8
    $region9: #{tpu_custom_call.1} parent=1 // pred_fallthru
      _
    // Predicated region
    $region10: #{tpu_custom_call.1} parent=1 // pred_check
      _
    $region11: #{tpu_custom_call.1} parent=1 // pred_check_branch
      %35 = sbr.rel (0) target = $region13
    $region12: #{tpu_custom_call.1} parent=1 // pred_region
      %36 = dma.done [#allocation3], 256
    $region13: #{tpu_custom_call.1} parent=1 // pred_fallthru
      _
    // Predicated region
    $region14: #{tpu_custom_call.1} parent=1 // pred_check
      _
    $region15: #{tpu_custom_call.1} parent=1 // pred_check_branch
      %38 = sbr.rel (0) target = $region17
    $region16: #{tpu_custom_call.1} parent=1 // pred_region
      %39 = dma.done [#allocation6], 512
    $region17: #{tpu_custom_call.1} parent=1 // pred_fallthru
      _
    %v40 = vld [vmem:[#allocation2] sm:$0xff]
    %v41 = vld [vmem:[#allocation2 + $0x8] sm:$0xff]
    %v42 = vld [vmem:[#allocation5] sm:$0xff]
    %v43 = vld [vmem:[#allocation5 + $0x8] sm:$0xff]
    %v44 = vld [vmem:[#allocation5 + $0x10] sm:$0xff]
    %v45 = vld [vmem:[#allocation5 + $0x18] sm:$0xff]
    %vm46 = vcmask 261120
    %v48 = vsel %vm46, %v40, 0
    %v51 = vsel %vm46, %v41, 0
    %53 = vmatprep.subr.mxu0 0.0
    %54 = vmatpush1.msra.mxu0 %v42
    %55 = vmatprep.subr.mxu0 0.0
    %56 = vmatpush1.msra.mxu0 %v43
    %57 = vmatprep.subr.mxu0 0.0
    %58 = vmatpush1.msra.mxu0 %v44
    %59 = vmatprep.subr.mxu0 0.0
    %60 = vmatpush1.msra.mxu0 %v45
    %61 = vmatprep.subr.mxu0 0.0
    %62 = vmatpush1.msra.mxu0 0.0
    %63 = vmatprep.subr.mxu0 0.0
    %64 = vmatpush1.msra.mxu0 0.0
    %65 = vmatprep.subr.mxu0 0.0
    %66 = vmatpush1.msra.mxu0 0.0
    %67 = vmatprep.subr.mxu0 0.0
    %68 = vmatpush1.msra.mxu0 0.0
    %69 = vmatprep.subr.mxu0 0.0
    %70 = vmatpush1.msra.mxu0 0.0
    %71 = vmatprep.subr.mxu0 0.0
    %72 = vmatpush1.msra.mxu0 0.0
    %73 = vmatprep.subr.mxu0 0.0
    %74 = vmatpush1.msra.mxu0 0.0
    %75 = vmatprep.subr.mxu0 0.0
    %76 = vmatpush1.msra.mxu0 0.0
    %77 = vmatprep.subr.mxu0 0.0
    %78 = vmatpush1.msra.mxu0 0.0
    %79 = vmatprep.subr.mxu0 0.0
    %80 = vmatpush1.msra.mxu0 0.0
    %81 = vmatprep.subr.mxu0 0.0
    %82 = vmatpush1.msra.mxu0 0.0
    %83 = vmatprep.subr.mxu0 0.0
    %84 = vmatpush1.msra.mxu0 0.0
    %85 = vmatprep.subr.mxu0 0.0
    %86 = vmatpush1.msra.mxu0 0.0
    %87 = vmatprep.subr.mxu0 0.0
    %88 = vmatpush1.msra.mxu0 0.0
    %89 = vmatprep.subr.mxu0 0.0
    %90 = vmatpush1.msra.mxu0 0.0
    %91 = vmatprep.subr.mxu0 0.0
    %92 = vmatpush1.msra.mxu0 0.0
    %93 = vmatprep.subr.mxu0 0.0
    %94 = vmatpush1.msra.mxu0 0.0
    %95 = vmatprep.subr.mxu0 0.0
    %96 = vmatpush1.msra.mxu0 0.0
    %97 = vmatprep.subr.mxu0 0.0
    %98 = vmatpush1.msra.mxu0 0.0
    %99 = vmatprep.subr.mxu0 0.0
    %100 = vmatpush1.msra.mxu0 0.0
    %101 = vmatprep.subr.mxu0 0.0
    %102 = vmatpush1.msra.mxu0 0.0
    %103 = vmatprep.subr.mxu0 0.0
    %104 = vmatpush1.msra.mxu0 0.0
    %105 = vmatprep.subr.mxu0 0.0
    %106 = vmatpush1.msra.mxu0 0.0
    %107 = vmatprep.subr.mxu0 0.0
    %108 = vmatpush1.msra.mxu0 0.0
    %109 = vmatprep.subr.mxu0 0.0
    %110 = vmatpush1.msra.mxu0 0.0
    %111 = vmatprep.subr.mxu0 0.0
    %112 = vmatpush1.msra.mxu0 0.0
    %113 = vmatprep.subr.mxu0 0.0
    %114 = vmatpush1.msra.mxu0 0.0
    %115 = vmatprep.subr.mxu0 0.0
    %116 = vmatpush1.msra.mxu0 0.0
    %117 = vmatprep.mubr.f32.mxu0 0.0
    %118 = vmatmul.mubr.f32.gmra.mrb[0].mxu0 %v48
    %v119 = vpop.f32.mrb[0].mxu0
    %v120 = vadd.f32 0.0, %v119
    %v121 = vpop.f32.mrb[0].mxu0
    %122 = vmatprep.mubr.f32.mxu0 0.0
    %123 = vmatmul.mubr.f32.gmra.mrb[0].mxu0 %v51
    %v124 = vpop.f32.mrb[0].mxu0
    %v125 = vadd.f32 0.0, %v124
    %v126 = vpop.f32.mrb[0].mxu0
    %127 = vdwg.mxu0
    %128 = vst.msk [vmem:[#allocation7] sm:$0xff] %vm46, %v120
    %129 = vst.msk [vmem:[#allocation7 + $0x8] sm:$0xff] %vm46, %v125
    // Predicated region
    $region18: #{tpu_custom_call.1} parent=1 // pred_check
      _
    $region19: #{tpu_custom_call.1} parent=1 // pred_check_branch
      %131 = sbr.rel (0) target = $region21
    $region20: #{tpu_custom_call.1} parent=1 // pred_region
      %s133 = ssub.s32 256, 256
      %134 = vsyncadd [#allocation4], %s133
      %s135 = sshll.u32 [#allocation7], 4
      %s136 = int_to_ptr.vmem [resolvable:$true] %s135
      %141 = dma.vmem_to_hbm [thread:$0]  %s136, 256, %s2, [#allocation4], 128, 128, 8
    $region21: #{tpu_custom_call.1} parent=1 // pred_fallthru
      _
    // Predicated region
    $region22: #{tpu_custom_call.1} parent=1 // pred_check
      _
    $region23: #{tpu_custom_call.1} parent=1 // pred_check_branch
      %143 = sbr.rel (0) target = $region25
    $region24: #{tpu_custom_call.1} parent=1 // pred_region
      %144 = dma.done [#allocation4], 256
    $region25: #{tpu_custom_call.1} parent=1 // pred_fallthru
      _
    %145 = vsyncpa [#allocation3], 1
    %146 = vsyncpa [#allocation6], 1
    %147 = vsyncpa [#allocation4], 1

</llo_original>
